<compile_context>
chip_gen: v7x
topology: tpu7x:2x2x1
jax: 0.10.0
libtpu: 0.0.40
codegen_flags: <defaults>
</compile_context>

<pallas_src>
import functools
import math

import jax
import jax.numpy as jnp
from jax import lax
from jax.experimental import pallas as pl
from jax.experimental.pallas import tpu as pltpu


def _self_attn_kernel(xkv_ref, xq_ref, wq_ref, bq_ref, wk_ref, bk_ref,
                      wv_ref, bv_ref, wout_ref, bout_ref, gamma_ref, beta_ref,
                      o_ref, k_scr, v_scr, attn_scr,
                      *, num_heads, head_dim, residual, use_layer_norm,
                      compute_dtype):
    qi = pl.program_id(1)

    # ---- K / V projection for the full sequence, once per batch element ----
    # Cached in VMEM scratch; reused by every query tile of this batch element
    # (the query-tile grid axis is "arbitrary", so iterations run in order).
    @pl.when(qi == 0)
    def _():
        xk = xkv_ref[0].astype(compute_dtype)                         # (N, C)
        k = jnp.dot(xk, wk_ref[...],
                    preferred_element_type=jnp.float32) + bk_ref[...]
        v = jnp.dot(xk, wv_ref[...],
                    preferred_element_type=jnp.float32) + bv_ref[...]
        k_scr[...] = k.astype(compute_dtype)
        v_scr[...] = v.astype(compute_dtype)

    # ---- Q projection for this query tile (scale pre-folded into wq/bq) ----
    x_tile = xq_ref[0]                                                # (TQ, C) f32
    q = jnp.dot(x_tile.astype(compute_dtype), wq_ref[...],
                preferred_element_type=jnp.float32) + bq_ref[...]
    q = q.astype(compute_dtype)

    k = k_scr[...]
    v = v_scr[...]

    # ---- per-head attention; heads write into a (TQ, C) VMEM slab ----
    # TODO(synk): for many heads with head_dim < 128, batch heads into one
    # dot_general (batch dim = head) to fill the MXU better.
    for h in range(num_heads):
        lo = h * head_dim
        qh = q[:, lo:lo + head_dim]
        kh = k[:, lo:lo + head_dim]
        vh = v[:, lo:lo + head_dim]
        # q @ k^T without materializing a transpose: contract the last dims.
        s = lax.dot_general(qh, kh, (((1,), (1,)), ((), ())),
                            preferred_element_type=jnp.float32)       # (TQ, N)
        s = s - jnp.max(s, axis=-1, keepdims=True)
        p = jnp.exp(s)
        p = p * pl.reciprocal(jnp.sum(p, axis=-1, keepdims=True), approx=True)
        pv = jnp.dot(p.astype(compute_dtype), vh,
                     preferred_element_type=jnp.float32)              # (TQ, D)
        attn_scr[:, lo:lo + head_dim] = pv.astype(compute_dtype)

    # ---- output projection + residual + LayerNorm (f32 elementwise) ----
    out = jnp.dot(attn_scr[...], wout_ref[...],
                  preferred_element_type=jnp.float32) + bout_ref[...]
    if residual:
        out = out + x_tile
    if use_layer_norm:
        mu = jnp.mean(out, axis=-1, keepdims=True)
        var = jnp.mean(jnp.square(out - mu), axis=-1, keepdims=True)
        out = (out - mu) * lax.rsqrt(var + 1e-5)
        out = out * gamma_ref[...] + beta_ref[...]

    o_ref[0] = out.astype(o_ref.dtype)


def self_attention(x, params, *, num_heads=1, residual=True, layer_norm=True,
                   compute_dtype=jnp.bfloat16, q_block=128):
    B, N, C = x.shape
    assert C % num_heads == 0
    head_dim = C // num_heads
    wqkv, bqkv, wout, bout, gamma, beta = params

    # Split the fused QKV weight and fold the attention scale into Q's
    # projection (cheaper than scaling the (N, N) score matrix in-kernel).
    scale = head_dim ** (-0.5)
    wq = (wqkv[:, 0 * C:1 * C] * scale).astype(compute_dtype)
    wk = wqkv[:, 1 * C:2 * C].astype(compute_dtype)
    wv = wqkv[:, 2 * C:3 * C].astype(compute_dtype)
    bq = (bqkv[:, 0 * C:1 * C] * scale).astype(jnp.float32)
    bk = bqkv[:, 1 * C:2 * C].astype(jnp.float32)
    bv = bqkv[:, 2 * C:3 * C].astype(jnp.float32)
    wout_c = wout.astype(compute_dtype)
    bout_c = bout.astype(jnp.float32)
    gamma_c = gamma.astype(jnp.float32)
    beta_c = beta.astype(jnp.float32)

    # Query-tile size: largest multiple of 8 (<= q_block) dividing N, else N.
    tq = N
    for cand in sorted({q_block, 128, 64, 32, 16, 8}, reverse=True):
        if cand % 8 == 0 and cand <= N and N % cand == 0:
            tq = cand
            break
    nq = N // tq

    kernel = functools.partial(
        _self_attn_kernel,
        num_heads=num_heads, head_dim=head_dim,
        residual=residual, use_layer_norm=layer_norm,
        compute_dtype=compute_dtype)

    def const(shape):
        return pl.BlockSpec(shape, lambda b, qi: (0,) * len(shape))

    return pl.pallas_call(
        kernel,
        out_shape=jax.ShapeDtypeStruct((B, N, C), x.dtype),
        grid_spec=pltpu.PrefetchScalarGridSpec(
            num_scalar_prefetch=0,
            grid=(B, nq),
            in_specs=[
                pl.BlockSpec((1, N, C), lambda b, qi: (b, 0, 0)),    # x: K/V source
                pl.BlockSpec((1, tq, C), lambda b, qi: (b, qi, 0)),  # x: Q tile + residual
                const((C, C)),     # wq (scaled, compute dtype)
                const((1, C)),     # bq (scaled, f32)
                const((C, C)),     # wk
                const((1, C)),     # bk
                const((C, C)),     # wv
                const((1, C)),     # bv
                const((C, C)),     # wout
                const((1, C)),     # bout
                const((1, C)),     # gamma
                const((1, C)),     # beta
            ],
            out_specs=pl.BlockSpec((1, tq, C), lambda b, qi: (b, qi, 0)),
            scratch_shapes=[
                pltpu.VMEM((N, C), compute_dtype),    # K cache (per batch elem)
                pltpu.VMEM((N, C), compute_dtype),    # V cache (per batch elem)
                pltpu.VMEM((tq, C), compute_dtype),   # per-head output slab
            ],
        ),
        compiler_params=pltpu.CompilerParams(
            # batch axis parallel (megacore on v7x when B >= 2); query-tile
            # axis must be "arbitrary" because the K/V scratch cache is
            # computed at qi == 0 and reused by later tiles.
            dimension_semantics=("parallel", "arbitrary")),
    )(x, x, wq, bq, wk, bk, wv, bv, wout_c, bout_c, gamma_c, beta_c)


def init_params(key, embed_dim):
    """Deterministic Xavier-uniform weights, zero biases, identity LayerNorm."""
    C = embed_dim
    k1, k2 = jax.random.split(key)
    a_qkv = math.sqrt(6.0 / (C + 3 * C))     # qkv.weight is (3C, C) in torch
    wqkv = jax.random.uniform(k1, (C, 3 * C), jnp.float32, -a_qkv, a_qkv)
    a_out = math.sqrt(6.0 / (C + C))
    wout = jax.random.uniform(k2, (C, C), jnp.float32, -a_out, a_out)
    bqkv = jnp.zeros((1, 3 * C), jnp.float32)
    bout = jnp.zeros((1, C), jnp.float32)
    gamma = jnp.ones((1, C), jnp.float32)
    beta = jnp.zeros((1, C), jnp.float32)
    return (wqkv, bqkv, wout, bout, gamma, beta)


def _reference(x, params, num_heads=1, residual=True, layer_norm=True):
    """Pure-JAX f32 reference mirroring the PyTorch forward."""
    wqkv, bqkv, wout, bout, gamma, beta = params
    B, N, C = x.shape
    D = C // num_heads
    qkv = x @ wqkv + bqkv                                   # (B, N, 3C)
    qkv = qkv.reshape(B, N, 3, num_heads, D).transpose(2, 0, 3, 1, 4)
    q, k, v = qkv[0], qkv[1], qkv[2]                        # (B, H, N, D)
    attn = jnp.einsum('bhnd,bhmd->bhnm', q, k) * (D ** -0.5)
    attn = jax.nn.softmax(attn, axis=-1)
    out = jnp.einsum('bhnm,bhmd->bhnd', attn, v)
    out = out.transpose(0, 2, 1, 3).reshape(B, N, C)
    out = out @ wout + bout
    if residual:
        out = out + x
    if layer_norm:
        mu = out.mean(-1, keepdims=True)
        var = ((out - mu) ** 2).mean(-1, keepdims=True)
        out = (out - mu) * lax.rsqrt(var + 1e-5) * gamma + beta
    return out


if __name__ == "__main__":
    B, N, C = 2, 8, 32

    key = jax.random.PRNGKey(0)
    kx, kp = jax.random.split(key)
    x = jax.random.normal(kx, (B, N, C), jnp.float32)
    params = init_params(kp, C)

    # f32 compute path, single head (tight tolerance).
    out_f32 = jax.block_until_ready(
        self_attention(x, params, num_heads=1,
                       residual=True, layer_norm=True,
                       compute_dtype=jnp.float32))
    ref1 = _reference(x, params, num_heads=1)
    assert out_f32.shape == (B, N, C)
    err1 = float(jnp.max(jnp.abs(out_f32 - ref1)))
    assert err1 < 5e-3, f"f32 mismatch vs reference: {err1}"

    # bf16 MXU-operand path (default), two heads (looser tolerance).
    out_bf16 = jax.block_until_ready(
        self_attention(x, params, num_heads=2,
                       residual=True, layer_norm=True,
                       compute_dtype=jnp.bfloat16))
    ref2 = _reference(x, params, num_heads=2)
    err2 = float(jnp.max(jnp.abs(out_bf16 - ref2)))
    assert err2 < 7e-2, f"bf16 mismatch vs reference: {err2}"

    print("KERNEL_OK")
</pallas_src>

<mosaic_0001>
module attributes {stable_mosaic.version = 11 : i64} {
  func.func @_self_attn_kernel(%arg0: i32, %arg1: i32, %arg2: memref<1x8x32xf32, #tpu.memory_space<vmem>>, %arg3: memref<1x8x32xf32, #tpu.memory_space<vmem>>, %arg4: memref<32x32xf32, #tpu.memory_space<vmem>>, %arg5: memref<1x32xf32, #tpu.memory_space<vmem>>, %arg6: memref<32x32xf32, #tpu.memory_space<vmem>>, %arg7: memref<1x32xf32, #tpu.memory_space<vmem>>, %arg8: memref<32x32xf32, #tpu.memory_space<vmem>>, %arg9: memref<1x32xf32, #tpu.memory_space<vmem>>, %arg10: memref<32x32xf32, #tpu.memory_space<vmem>>, %arg11: memref<1x32xf32, #tpu.memory_space<vmem>>, %arg12: memref<1x32xf32, #tpu.memory_space<vmem>>, %arg13: memref<1x32xf32, #tpu.memory_space<vmem>>, %arg14: memref<1x8x32xf32, #tpu.memory_space<vmem>>, %arg15: memref<8x32xf32, #tpu.memory_space<vmem>>, %arg16: memref<8x32xf32, #tpu.memory_space<vmem>>, %arg17: memref<8x32xf32, #tpu.memory_space<vmem>>) attributes {dimension_semantics = [#tpu.dimension_semantics<parallel>, #tpu.dimension_semantics<arbitrary>], iteration_bounds = array<i64: 2, 1>, scalar_prefetch = 0 : i64, scratch_operands = 3 : i64, tpu.core_type = #tpu.core_type<tc>, window_params = [{transform_indices = @transform_0, window_bounds = array<i64: 1, 8, 32>}, {transform_indices = @transform_1, window_bounds = array<i64: 1, 8, 32>}, {pipeline_mode = #tpu.pipeline_mode<synchronous>, transform_indices = @transform_2, window_bounds = array<i64: 32, 32>}, {pipeline_mode = #tpu.pipeline_mode<synchronous>, transform_indices = @transform_3, window_bounds = array<i64: 1, 32>}, {pipeline_mode = #tpu.pipeline_mode<synchronous>, transform_indices = @transform_4, window_bounds = array<i64: 32, 32>}, {pipeline_mode = #tpu.pipeline_mode<synchronous>, transform_indices = @transform_5, window_bounds = array<i64: 1, 32>}, {pipeline_mode = #tpu.pipeline_mode<synchronous>, transform_indices = @transform_6, window_bounds = array<i64: 32, 32>}, {pipeline_mode = #tpu.pipeline_mode<synchronous>, transform_indices = @transform_7, window_bounds = array<i64: 1, 32>}, {pipeline_mode = #tpu.pipeline_mode<synchronous>, transform_indices = @transform_8, window_bounds = array<i64: 32, 32>}, {pipeline_mode = #tpu.pipeline_mode<synchronous>, transform_indices = @transform_9, window_bounds = array<i64: 1, 32>}, {pipeline_mode = #tpu.pipeline_mode<synchronous>, transform_indices = @transform_10, window_bounds = array<i64: 1, 32>}, {pipeline_mode = #tpu.pipeline_mode<synchronous>, transform_indices = @transform_11, window_bounds = array<i64: 1, 32>}, {transform_indices = @transform_12, window_bounds = array<i64: 1, 8, 32>}]} {
    %c0_i32 = arith.constant 0 : i32
    %0 = arith.cmpi eq, %arg1, %c0_i32 : i32
    %1 = arith.extui %0 : i1 to i32
    %c0_i32_0 = arith.constant 0 : i32
    %2 = arith.cmpi ne, %1, %c0_i32_0 : i32
    scf.if %2 {
      %c0_36 = arith.constant 0 : index
      %c0_37 = arith.constant 0 : index
      %c0_38 = arith.constant 0 : index
      %59 = vector.load %arg2[%c0_36, %c0_37, %c0_38] : memref<1x8x32xf32, #tpu.memory_space<vmem>>, vector<1x8x32xf32>
      %60 = vector.shape_cast %59 : vector<1x8x32xf32> to vector<8x32xf32>
      %c0_39 = arith.constant 0 : index
      %c0_40 = arith.constant 0 : index
      %61 = vector.load %arg6[%c0_39, %c0_40] : memref<32x32xf32, #tpu.memory_space<vmem>>, vector<32x32xf32>
      %cst_41 = arith.constant dense<0.000000e+00> : vector<8x32xf32>
      %62 = tpu.matmul %60, %61, %cst_41 {dimension_numbers = #tpu.dot_dimension_numbers<[1], [0], [0], [1], [0, 0, 1, 1], [], []>} : vector<8x32xf32>, vector<32x32xf32>, vector<8x32xf32> -> vector<8x32xf32>
      %c0_42 = arith.constant 0 : index
      %c0_43 = arith.constant 0 : index
      %63 = vector.load %arg7[%c0_42, %c0_43] : memref<1x32xf32, #tpu.memory_space<vmem>>, vector<1x32xf32>
      %64 = vector.broadcast %63 : vector<1x32xf32> to vector<8x32xf32>
      %65 = arith.addf %62, %64 : vector<8x32xf32>
      %c0_44 = arith.constant 0 : index
      %c0_45 = arith.constant 0 : index
      %66 = vector.load %arg8[%c0_44, %c0_45] : memref<32x32xf32, #tpu.memory_space<vmem>>, vector<32x32xf32>
      %cst_46 = arith.constant dense<0.000000e+00> : vector<8x32xf32>
      %67 = tpu.matmul %60, %66, %cst_46 {dimension_numbers = #tpu.dot_dimension_numbers<[1], [0], [0], [1], [0, 0, 1, 1], [], []>} : vector<8x32xf32>, vector<32x32xf32>, vector<8x32xf32> -> vector<8x32xf32>
      %c0_47 = arith.constant 0 : index
      %c0_48 = arith.constant 0 : index
      %68 = vector.load %arg9[%c0_47, %c0_48] : memref<1x32xf32, #tpu.memory_space<vmem>>, vector<1x32xf32>
      %69 = vector.broadcast %68 : vector<1x32xf32> to vector<8x32xf32>
      %70 = arith.addf %67, %69 : vector<8x32xf32>
      %c0_49 = arith.constant 0 : index
      %c0_50 = arith.constant 0 : index
      %71 = vector.load %arg15[%c0_49, %c0_50] : memref<8x32xf32, #tpu.memory_space<vmem>>, vector<8x32xf32>
      tpu.vector_store %arg15[%c0_49, %c0_50], %65 {strides = array<i32>} : memref<8x32xf32, #tpu.memory_space<vmem>>, vector<8x32xf32>,
      %c0_51 = arith.constant 0 : index
      %c0_52 = arith.constant 0 : index
      %72 = vector.load %arg16[%c0_51, %c0_52] : memref<8x32xf32, #tpu.memory_space<vmem>>, vector<8x32xf32>
      tpu.vector_store %arg16[%c0_51, %c0_52], %70 {strides = array<i32>} : memref<8x32xf32, #tpu.memory_space<vmem>>, vector<8x32xf32>,
    } else {
    }
    %c0 = arith.constant 0 : index
    %c0_1 = arith.constant 0 : index
    %c0_2 = arith.constant 0 : index
    %3 = vector.load %arg3[%c0, %c0_1, %c0_2] : memref<1x8x32xf32, #tpu.memory_space<vmem>>, vector<1x8x32xf32>
    %4 = vector.shape_cast %3 : vector<1x8x32xf32> to vector<8x32xf32>
    %c0_3 = arith.constant 0 : index
    %c0_4 = arith.constant 0 : index
    %5 = vector.load %arg4[%c0_3, %c0_4] : memref<32x32xf32, #tpu.memory_space<vmem>>, vector<32x32xf32>
    %cst = arith.constant dense<0.000000e+00> : vector<8x32xf32>
    %6 = tpu.matmul %4, %5, %cst {dimension_numbers = #tpu.dot_dimension_numbers<[1], [0], [0], [1], [0, 0, 1, 1], [], []>} : vector<8x32xf32>, vector<32x32xf32>, vector<8x32xf32> -> vector<8x32xf32>
    %c0_5 = arith.constant 0 : index
    %c0_6 = arith.constant 0 : index
    %7 = vector.load %arg5[%c0_5, %c0_6] : memref<1x32xf32, #tpu.memory_space<vmem>>, vector<1x32xf32>
    %8 = vector.broadcast %7 : vector<1x32xf32> to vector<8x32xf32>
    %9 = arith.addf %6, %8 : vector<8x32xf32>
    %c0_7 = arith.constant 0 : index
    %c0_8 = arith.constant 0 : index
    %10 = vector.load %arg15[%c0_7, %c0_8] : memref<8x32xf32, #tpu.memory_space<vmem>>, vector<8x32xf32>
    %c0_9 = arith.constant 0 : index
    %c0_10 = arith.constant 0 : index
    %11 = vector.load %arg16[%c0_9, %c0_10] : memref<8x32xf32, #tpu.memory_space<vmem>>, vector<8x32xf32>
    %cst_11 = arith.constant dense<0.000000e+00> : vector<8x8xf32>
    %12 = tpu.matmul %9, %10, %cst_11 {dimension_numbers = #tpu.dot_dimension_numbers<[1], [1], [0], [0], [0, 0, 1, 0], [], []>} : vector<8x32xf32>, vector<8x32xf32>, vector<8x8xf32> -> vector<8x8xf32>
    %cst_12 = arith.constant dense<0xFF800000> : vector<8xf32>
    %13 = vector.multi_reduction <maximumf>, %12, %cst_12 [1] : vector<8x8xf32> to vector<8xf32>
    %14 = vector.shape_cast %13 : vector<8xf32> to vector<8x1xf32>
    %15 = vector.broadcast %14 : vector<8x1xf32> to vector<8x8xf32>
    %16 = arith.subf %12, %15 : vector<8x8xf32>
    %17 = math.exp %16 : vector<8x8xf32>
    %cst_13 = arith.constant dense<0.000000e+00> : vector<8xf32>
    %18 = vector.multi_reduction <add>, %17, %cst_13 [1] : vector<8x8xf32> to vector<8xf32>
    %19 = vector.shape_cast %18 : vector<8xf32> to vector<8x1xf32>
    %20 = tpu.reciprocal %19 {approx = true} : vector<8x1xf32> -> vector<8x1xf32>
    %21 = vector.broadcast %20 : vector<8x1xf32> to vector<8x8xf32>
    %22 = arith.mulf %17, %21 : vector<8x8xf32>
    %cst_14 = arith.constant dense<0.000000e+00> : vector<8x32xf32>
    %23 = tpu.matmul %22, %11, %cst_14 {dimension_numbers = #tpu.dot_dimension_numbers<[1], [0], [0], [1], [0, 0, 1, 1], [], []>} : vector<8x8xf32>, vector<8x32xf32>, vector<8x32xf32> -> vector<8x32xf32>
    %c0_15 = arith.constant 0 : index
    %c0_16 = arith.constant 0 : index
    %24 = vector.load %arg17[%c0_15, %c0_16] : memref<8x32xf32, #tpu.memory_space<vmem>>, vector<8x32xf32>
    tpu.vector_store %arg17[%c0_15, %c0_16], %23 {strides = array<i32>} : memref<8x32xf32, #tpu.memory_space<vmem>>, vector<8x32xf32>,
    %c0_17 = arith.constant 0 : index
    %c0_18 = arith.constant 0 : index
    %25 = vector.load %arg17[%c0_17, %c0_18] : memref<8x32xf32, #tpu.memory_space<vmem>>, vector<8x32xf32>
    %c0_19 = arith.constant 0 : index
    %c0_20 = arith.constant 0 : index
    %26 = vector.load %arg10[%c0_19, %c0_20] : memref<32x32xf32, #tpu.memory_space<vmem>>, vector<32x32xf32>
    %cst_21 = arith.constant dense<0.000000e+00> : vector<8x32xf32>
    %27 = tpu.matmul %25, %26, %cst_21 {dimension_numbers = #tpu.dot_dimension_numbers<[1], [0], [0], [1], [0, 0, 1, 1], [], []>} : vector<8x32xf32>, vector<32x32xf32>, vector<8x32xf32> -> vector<8x32xf32>
    %c0_22 = arith.constant 0 : index
    %c0_23 = arith.constant 0 : index
    %28 = vector.load %arg11[%c0_22, %c0_23] : memref<1x32xf32, #tpu.memory_space<vmem>>, vector<1x32xf32>
    %29 = vector.broadcast %28 : vector<1x32xf32> to vector<8x32xf32>
    %30 = arith.addf %27, %29 : vector<8x32xf32>
    %31 = arith.addf %30, %4 : vector<8x32xf32>
    %cst_24 = arith.constant dense<0.000000e+00> : vector<8xf32>
    %32 = vector.multi_reduction <add>, %31, %cst_24 [1] : vector<8x32xf32> to vector<8xf32>
    %33 = vector.shape_cast %32 : vector<8xf32> to vector<8x1xf32>
    %cst_25 = arith.constant 3.200000e+01 : f32
    %34 = vector.broadcast %cst_25 : f32 to vector<8x1xf32>
    %35 = arith.divf %33, %34 : vector<8x1xf32>
    %36 = vector.broadcast %35 : vector<8x1xf32> to vector<8x32xf32>
    %37 = arith.subf %31, %36 : vector<8x32xf32>
    %38 = arith.mulf %37, %37 : vector<8x32xf32>
    %cst_26 = arith.constant dense<0.000000e+00> : vector<8xf32>
    %39 = vector.multi_reduction <add>, %38, %cst_26 [1] : vector<8x32xf32> to vector<8xf32>
    %40 = vector.shape_cast %39 : vector<8xf32> to vector<8x1xf32>
    %cst_27 = arith.constant 3.200000e+01 : f32
    %41 = vector.broadcast %cst_27 : f32 to vector<8x1xf32>
    %42 = arith.divf %40, %41 : vector<8x1xf32>
    %43 = vector.broadcast %35 : vector<8x1xf32> to vector<8x32xf32>
    %44 = arith.subf %31, %43 : vector<8x32xf32>
    %cst_28 = arith.constant 9.99999974E-6 : f32
    %45 = vector.broadcast %cst_28 : f32 to vector<8x1xf32>
    %46 = arith.addf %42, %45 : vector<8x1xf32>
    %47 = math.rsqrt %46 : vector<8x1xf32>
    %48 = vector.broadcast %47 : vector<8x1xf32> to vector<8x32xf32>
    %49 = arith.mulf %44, %48 : vector<8x32xf32>
    %c0_29 = arith.constant 0 : index
    %c0_30 = arith.constant 0 : index
    %50 = vector.load %arg12[%c0_29, %c0_30] : memref<1x32xf32, #tpu.memory_space<vmem>>, vector<1x32xf32>
    %51 = vector.broadcast %50 : vector<1x32xf32> to vector<8x32xf32>
    %52 = arith.mulf %49, %51 : vector<8x32xf32>
    %c0_31 = arith.constant 0 : index
    %c0_32 = arith.constant 0 : index
    %53 = vector.load %arg13[%c0_31, %c0_32] : memref<1x32xf32, #tpu.memory_space<vmem>>, vector<1x32xf32>
    %54 = vector.broadcast %53 : vector<1x32xf32> to vector<8x32xf32>
    %55 = arith.addf %52, %54 : vector<8x32xf32>
    %c0_33 = arith.constant 0 : index
    %c0_34 = arith.constant 0 : index
    %c0_35 = arith.constant 0 : index
    %56 = vector.load %arg14[%c0_33, %c0_34, %c0_35] : memref<1x8x32xf32, #tpu.memory_space<vmem>>, vector<1x8x32xf32>
    %57 = vector.shape_cast %56 : vector<1x8x32xf32> to vector<8x32xf32>
    %58 = vector.shape_cast %55 : vector<8x32xf32> to vector<1x8x32xf32>
    tpu.vector_store %arg14[%c0_33, %c0_34, %c0_35], %58 {strides = array<i32>} : memref<1x8x32xf32, #tpu.memory_space<vmem>>, vector<1x8x32xf32>,
    return
  }
  func.func @transform_0(%arg0: i32, %arg1: i32) -> (i32, i32, i32) {
    %c0_i32 = arith.constant 0 : i32
    %c0_i32_0 = arith.constant 0 : i32
    %c0_i32_1 = arith.constant 0 : i32
    return %arg0, %c0_i32, %c0_i32_0 : i32, i32, i32
  }
  func.func @transform_1(%arg0: i32, %arg1: i32) -> (i32, i32, i32) {
    %c0_i32 = arith.constant 0 : i32
    %c0_i32_0 = arith.constant 0 : i32
    return %arg0, %arg1, %c0_i32 : i32, i32, i32
  }
  func.func @transform_2(%arg0: i32, %arg1: i32) -> (i32, i32) {
    %c0_i32 = arith.constant 0 : i32
    %c0_i32_0 = arith.constant 0 : i32
    %c0_i32_1 = arith.constant 0 : i32
    return %c0_i32, %c0_i32_0 : i32, i32
  }
  func.func @transform_3(%arg0: i32, %arg1: i32) -> (i32, i32) {
    %c0_i32 = arith.constant 0 : i32
    %c0_i32_0 = arith.constant 0 : i32
    %c0_i32_1 = arith.constant 0 : i32
    return %c0_i32, %c0_i32_0 : i32, i32
  }
  func.func @transform_4(%arg0: i32, %arg1: i32) -> (i32, i32) {
    %c0_i32 = arith.constant 0 : i32
    %c0_i32_0 = arith.constant 0 : i32
    %c0_i32_1 = arith.constant 0 : i32
    return %c0_i32, %c0_i32_0 : i32, i32
  }
  func.func @transform_5(%arg0: i32, %arg1: i32) -> (i32, i32) {
    %c0_i32 = arith.constant 0 : i32
    %c0_i32_0 = arith.constant 0 : i32
    %c0_i32_1 = arith.constant 0 : i32
    return %c0_i32, %c0_i32_0 : i32, i32
  }
  func.func @transform_6(%arg0: i32, %arg1: i32) -> (i32, i32) {
    %c0_i32 = arith.constant 0 : i32
    %c0_i32_0 = arith.constant 0 : i32
    %c0_i32_1 = arith.constant 0 : i32
    return %c0_i32, %c0_i32_0 : i32, i32
  }
  func.func @transform_7(%arg0: i32, %arg1: i32) -> (i32, i32) {
    %c0_i32 = arith.constant 0 : i32
    %c0_i32_0 = arith.constant 0 : i32
    %c0_i32_1 = arith.constant 0 : i32
    return %c0_i32, %c0_i32_0 : i32, i32
  }
  func.func @transform_8(%arg0: i32, %arg1: i32) -> (i32, i32) {
    %c0_i32 = arith.constant 0 : i32
    %c0_i32_0 = arith.constant 0 : i32
    %c0_i32_1 = arith.constant 0 : i32
    return %c0_i32, %c0_i32_0 : i32, i32
  }
  func.func @transform_9(%arg0: i32, %arg1: i32) -> (i32, i32) {
    %c0_i32 = arith.constant 0 : i32
    %c0_i32_0 = arith.constant 0 : i32
    %c0_i32_1 = arith.constant 0 : i32
    return %c0_i32, %c0_i32_0 : i32, i32
  }
  func.func @transform_10(%arg0: i32, %arg1: i32) -> (i32, i32) {
    %c0_i32 = arith.constant 0 : i32
    %c0_i32_0 = arith.constant 0 : i32
    %c0_i32_1 = arith.constant 0 : i32
    return %c0_i32, %c0_i32_0 : i32, i32
  }
  func.func @transform_11(%arg0: i32, %arg1: i32) -> (i32, i32) {
    %c0_i32 = arith.constant 0 : i32
    %c0_i32_0 = arith.constant 0 : i32
    %c0_i32_1 = arith.constant 0 : i32
    return %c0_i32, %c0_i32_0 : i32, i32
  }
  func.func @transform_12(%arg0: i32, %arg1: i32) -> (i32, i32, i32) {
    %c0_i32 = arith.constant 0 : i32
    %c0_i32_0 = arith.constant 0 : i32
    return %arg0, %arg1, %c0_i32 : i32, i32, i32
  }
}

</mosaic_0001>

<llo_original>
// kernel: tpu_custom_call.1
$region0: #{tpu_custom_call.1}
  #allocation0 [shape = 'u32[]', space=smem, size = 0x4, offset = 0x4, fixed_abs, tag = 'smem constant byte address 0x4 - core index']
  #allocation1 [shape = 'u32[144,128]{1,0:T(1,128)}', space=vmem, size = 0x12000, scoped, tag = 'internal scratch']
  #allocation2 [shape = 'f32[8,32]{1,0:T(8,128)}', space=vmem, size = 0x1000, scoped, tag = 'scratch operand']
  #allocation3 [shape = 'f32[8,32]{1,0:T(8,128)}', space=vmem, size = 0x1000, scoped, tag = 'scratch operand']
  #allocation4 [shape = 'f32[8,32]{1,0:T(8,128)}', space=vmem, size = 0x1000, scoped, tag = 'scratch operand']
  %s0 = inlined_call_operand.hbm [shape: f32[2,8,32], index: 0, kind: input, shape index: {}]
  %s1 = inlined_call_operand.hbm [shape: f32[2,8,32], index: 1, kind: input, shape index: {}]
  %s2 = inlined_call_operand.hbm [shape: f32[32,32], index: 2, kind: input, shape index: {}]
  %s3 = inlined_call_operand.vmem [shape: f32[1,32], index: 3, kind: input, shape index: {}]
  %s4 = inlined_call_operand.hbm [shape: f32[32,32], index: 4, kind: input, shape index: {}]
  %s5 = inlined_call_operand.vmem [shape: f32[1,32], index: 5, kind: input, shape index: {}]
  %s6 = inlined_call_operand.hbm [shape: f32[32,32], index: 6, kind: input, shape index: {}]
  %s7 = inlined_call_operand.vmem [shape: f32[1,32], index: 7, kind: input, shape index: {}]
  %s8 = inlined_call_operand.hbm [shape: f32[32,32], index: 8, kind: input, shape index: {}]
  %s9 = inlined_call_operand.vmem [shape: f32[1,32], index: 9, kind: input, shape index: {}]
  %s10 = inlined_call_operand.vmem [shape: f32[1,32], index: 10, kind: input, shape index: {}]
  %s11 = inlined_call_operand.vmem [shape: f32[1,32], index: 11, kind: input, shape index: {}]
  %s12 = inlined_call_operand.hbm [shape: f32[2,8,32], index: 12, kind: output, shape index: {}]
  %s13 = sld [smem:[#allocation0]]
  $region109: #{tpu_custom_call.1} parent=0
    _
  %s15 = ssub.s32 1, %s13
  %s16 = scalar_select 0, %s15, %s13
  $region1: #{tpu_custom_call.1} parent=0
    #allocation5 [shape = 'u8[8192]{0}', space=vmem, size = 0x2000, scoped, tag = 'input window, operand 0']
    #allocation6 [shape = 's32[2]{0}', space=sflag, size = 0x8, scoped, tag = 'scoped memory for tpu_custom_call.1']
    #allocation7 [shape = 's32[2]{0}', space=sflag, size = 0x8, scoped, tag = 'scoped memory for tpu_custom_call.1']
    #allocation8 [shape = 'u8[8192]{0}', space=vmem, size = 0x2000, scoped, tag = 'input window, operand 1']
    #allocation9 [shape = 's32[2]{0}', space=sflag, size = 0x8, scoped, tag = 'scoped memory for tpu_custom_call.1']
    #allocation10 [shape = 'u8[16384]{0}', space=vmem, size = 0x4000, scoped, tag = 'input window, operand 2, single buffered']
    #allocation11 [shape = 'u8[16384]{0}', space=vmem, size = 0x4000, scoped, tag = 'input window, operand 4, single buffered']
    #allocation12 [shape = 's32[1]{0}', space=sflag, size = 0x4, scoped, tag = 'scoped memory for tpu_custom_call.1']
    #allocation13 [shape = 'u8[16384]{0}', space=vmem, size = 0x4000, scoped, tag = 'input window, operand 6, single buffered']
    #allocation14 [shape = 'u8[16384]{0}', space=vmem, size = 0x4000, scoped, tag = 'input window, operand 8, single buffered']
    #allocation15 [shape = 's32[1]{0}', space=sflag, size = 0x4, scoped, tag = 'scoped memory for tpu_custom_call.1']
    #allocation16 [shape = 'u8[8192]{0}', space=vmem, size = 0x2000, scoped, tag = 'output window, operand 0']
    %17 = vsyncpa [#allocation6], 0
    %s18 = scalar_lea.sflag [#allocation6], 1
    %19 = vsyncpa %s18, 0
    %20 = vsyncpa [#allocation9], 0
    %s21 = scalar_lea.sflag [#allocation9], 1
    %22 = vsyncpa %s21, 0
    %23 = vsyncpa [#allocation12], 0
    %24 = vsyncpa [#allocation15], 0
    %25 = vsyncpa [#allocation7], 0
    %s26 = scalar_lea.sflag [#allocation7], 1
    %27 = vsyncpa %s26, 0
    loop: start=0, step=1, limit=4
    $region2: #{tpu_custom_call.1} parent=1 // loop_pre_header
      _
    $region3: #{tpu_custom_call.1} parent=1 // loop_header
      %s29 = sphi 0, %s33
      %p30 = scmp.ge.s32.totalorder %s29, 4
      %s36 = sphi 0, %s48
      %s37 = sphi 0, %s44
      %s38 = sphi 0, %s36
      %s39 = sphi 0, %s37
      %s40 = sphi 0, %s38
      %s41 = sphi 0, %s39
      %s51 = sphi 0, %s53
      %s54 = sphi 0, %s51
      %s55 = sphi 0, %s54
      %s71 = sphi 0, %s55
      %s79 = sphi 0, %s81
      %s82 = sphi 0, %s79
      %s83 = sphi 0, %s82
      %s99 = sphi 0, %s83
      %s103 = sphi 0, %s103
      %s105 = sphi 0, %s103
      %s106 = sphi 0, %s105
      %s120 = sphi 0, %s106
      %s124 = sphi 0, %s124
      %s126 = sphi 0, %s124
      %s127 = sphi 0, %s126
      %s141 = sphi 0, %s127
      %s145 = sphi 0, %s145
      %s147 = sphi 0, %s145
      %s148 = sphi 0, %s147
      %s162 = sphi 0, %s148
      %s166 = sphi 0, %s166
      %s168 = sphi 0, %s166
      %s169 = sphi 0, %s168
      %s183 = sphi 0, %s169
      %s187 = sphi 0, %s187
      %s189 = sphi 0, %s187
      %s190 = sphi 0, %s189
      %s204 = sphi 0, %s190
      %s208 = sphi 0, %s208
      %s210 = sphi 0, %s208
      %s211 = sphi 0, %s210
      %s225 = sphi 0, %s211
      %s229 = sphi 0, %s229
      %s231 = sphi 0, %s229
      %s232 = sphi 0, %s231
      %s246 = sphi 0, %s232
      %s250 = sphi 0, %s250
      %s252 = sphi 0, %s250
      %s253 = sphi 0, %s252
      %s267 = sphi 0, %s253
      %s271 = sphi 0, %s271
      %s273 = sphi 0, %s271
      %s274 = sphi 0, %s273
      %s288 = sphi 0, %s274
      %s292 = sphi 0, %s292
      %s294 = sphi 0, %s292
      %s295 = sphi 0, %s294
      %s309 = sphi 0, %s295
      %s317 = sphi 0, %s319
      %s320 = sphi 0, %s317
      %s321 = sphi 0, %s320
      %s337 = sphi 0, %s321
    $region4: #{tpu_custom_call.1} parent=1 // loop_header_branch
      %32 = sbr.rel (%p30) target = $region8
    $region5: #{tpu_custom_call.1} parent=1 // loop_body
      %s34 = ssub.s32 %s29, 1
      %s35 = ssub.s32 %s29, 2
      %s42 = sadd.s32 1, %s37
      %p43 = scmp.ge.s32.totalorder %s42, 1
      %s44 = scalar_select %p43, 0, %s42
      %s45 = sadd.s32 1, %s36
      %s46 = scalar_select %p43, %s45, %s36
      %p47 = scmp.ge.s32.totalorder %s46, 2
      %s48 = scalar_select %p47, 0, %s46
      %s49 = ssub.s32 %s36, %s48
      %p50 = scmp.eq.s32.totalorder %s49, 0
      %s52 = sadd.s32 %s51, 1
      %s53 = scalar_select %p50, %s51, %s52
      %p56 = pneg %p50
      %p57 = scmp.eq.s32.totalorder %s29, 1
      %p58 = por %p56, %p57
      %p59 = scmp.ne.s32.totalorder %s51, %s54
      %p60 = scmp.eq.s32.totalorder %s29, 0
      %p61 = por %p59, %p60
      %p62 = scmp.ne.s32.totalorder %s51, %s54
      %p63 = scmp.eq.s32.totalorder %s34, 1
      %p64 = por %p62, %p63
      %p65 = scmp.ne.s32.totalorder %s54, %s55
      %p66 = scmp.eq.s32.totalorder %s34, 0
      %p67 = por %p65, %p66
      %p68 = scmp.ne.s32.totalorder %s54, %s55
      %p69 = scmp.eq.s32.totalorder %s35, 1
      %p70 = por %p68, %p69
      %p72 = scmp.ne.s32.totalorder %s55, %s71
      %p73 = scmp.eq.s32.totalorder %s35, 0
      %p74 = por %p72, %p73
      %s75 = ssub.s32 %s36, %s48
      %s76 = ssub.s32 %s37, %s44
      %s77 = sor.u32 %s75, %s76
      %p78 = scmp.eq.s32.totalorder %s77, 0
      %s80 = sadd.s32 %s79, 1
      %s81 = scalar_select %p78, %s79, %s80
      %p84 = pneg %p78
      %p85 = scmp.eq.s32.totalorder %s29, 1
      %p86 = por %p84, %p85
      %p87 = scmp.ne.s32.totalorder %s79, %s82
      %p88 = scmp.eq.s32.totalorder %s29, 0
      %p89 = por %p87, %p88
      %p90 = scmp.ne.s32.totalorder %s79, %s82
      %p91 = scmp.eq.s32.totalorder %s34, 1
      %p92 = por %p90, %p91
      %p93 = scmp.ne.s32.totalorder %s82, %s83
      %p94 = scmp.eq.s32.totalorder %s34, 0
      %p95 = por %p93, %p94
      %p96 = scmp.ne.s32.totalorder %s82, %s83
      %p97 = scmp.eq.s32.totalorder %s35, 1
      %p98 = por %p96, %p97
      %p100 = scmp.ne.s32.totalorder %s83, %s99
      %p101 = scmp.eq.s32.totalorder %s35, 0
      %p102 = por %p100, %p101
      %s104 = sadd.s32 %s103, 1
      %p107 = scmp.eq.s32.totalorder %s29, 1
      %p108 = scmp.ne.s32.totalorder %s103, %s105
      %p109 = scmp.eq.s32.totalorder %s29, 0
      %p110 = por %p108, %p109
      %p111 = scmp.ne.s32.totalorder %s103, %s105
      %p112 = scmp.eq.s32.totalorder %s34, 1
      %p113 = por %p111, %p112
      %p114 = scmp.ne.s32.totalorder %s105, %s106
      %p115 = scmp.eq.s32.totalorder %s34, 0
      %p116 = por %p114, %p115
      %p117 = scmp.ne.s32.totalorder %s105, %s106
      %p118 = scmp.eq.s32.totalorder %s35, 1
      %p119 = por %p117, %p118
      %p121 = scmp.ne.s32.totalorder %s106, %s120
      %p122 = scmp.eq.s32.totalorder %s35, 0
      %p123 = por %p121, %p122
      %s125 = sadd.s32 %s124, 1
      %p128 = scmp.eq.s32.totalorder %s29, 1
      %p129 = scmp.ne.s32.totalorder %s124, %s126
      %p130 = scmp.eq.s32.totalorder %s29, 0
      %p131 = por %p129, %p130
      %p132 = scmp.ne.s32.totalorder %s124, %s126
      %p133 = scmp.eq.s32.totalorder %s34, 1
      %p134 = por %p132, %p133
      %p135 = scmp.ne.s32.totalorder %s126, %s127
      %p136 = scmp.eq.s32.totalorder %s34, 0
      %p137 = por %p135, %p136
      %p138 = scmp.ne.s32.totalorder %s126, %s127
      %p139 = scmp.eq.s32.totalorder %s35, 1
      %p140 = por %p138, %p139
      %p142 = scmp.ne.s32.totalorder %s127, %s141
      %p143 = scmp.eq.s32.totalorder %s35, 0
      %p144 = por %p142, %p143
      %s146 = sadd.s32 %s145, 1
      %p149 = scmp.eq.s32.totalorder %s29, 1
      %p150 = scmp.ne.s32.totalorder %s145, %s147
      %p151 = scmp.eq.s32.totalorder %s29, 0
      %p152 = por %p150, %p151
      %p153 = scmp.ne.s32.totalorder %s145, %s147
      %p154 = scmp.eq.s32.totalorder %s34, 1
      %p155 = por %p153, %p154
      %p156 = scmp.ne.s32.totalorder %s147, %s148
      %p157 = scmp.eq.s32.totalorder %s34, 0
      %p158 = por %p156, %p157
      %p159 = scmp.ne.s32.totalorder %s147, %s148
      %p160 = scmp.eq.s32.totalorder %s35, 1
      %p161 = por %p159, %p160
      %p163 = scmp.ne.s32.totalorder %s148, %s162
      %p164 = scmp.eq.s32.totalorder %s35, 0
      %p165 = por %p163, %p164
      %s167 = sadd.s32 %s166, 1
      %p170 = scmp.eq.s32.totalorder %s29, 1
      %p171 = scmp.ne.s32.totalorder %s166, %s168
      %p172 = scmp.eq.s32.totalorder %s29, 0
      %p173 = por %p171, %p172
      %p174 = scmp.ne.s32.totalorder %s166, %s168
      %p175 = scmp.eq.s32.totalorder %s34, 1
      %p176 = por %p174, %p175
      %p177 = scmp.ne.s32.totalorder %s168, %s169
      %p178 = scmp.eq.s32.totalorder %s34, 0
      %p179 = por %p177, %p178
      %p180 = scmp.ne.s32.totalorder %s168, %s169
      %p181 = scmp.eq.s32.totalorder %s35, 1
      %p182 = por %p180, %p181
      %p184 = scmp.ne.s32.totalorder %s169, %s183
      %p185 = scmp.eq.s32.totalorder %s35, 0
      %p186 = por %p184, %p185
      %s188 = sadd.s32 %s187, 1
      %p191 = scmp.eq.s32.totalorder %s29, 1
      %p192 = scmp.ne.s32.totalorder %s187, %s189
      %p193 = scmp.eq.s32.totalorder %s29, 0
      %p194 = por %p192, %p193
      %p195 = scmp.ne.s32.totalorder %s187, %s189
      %p196 = scmp.eq.s32.totalorder %s34, 1
      %p197 = por %p195, %p196
      %p198 = scmp.ne.s32.totalorder %s189, %s190
      %p199 = scmp.eq.s32.totalorder %s34, 0
      %p200 = por %p198, %p199
      %p201 = scmp.ne.s32.totalorder %s189, %s190
      %p202 = scmp.eq.s32.totalorder %s35, 1
      %p203 = por %p201, %p202
      %p205 = scmp.ne.s32.totalorder %s190, %s204
      %p206 = scmp.eq.s32.totalorder %s35, 0
      %p207 = por %p205, %p206
      %s209 = sadd.s32 %s208, 1
      %p212 = scmp.eq.s32.totalorder %s29, 1
      %p213 = scmp.ne.s32.totalorder %s208, %s210
      %p214 = scmp.eq.s32.totalorder %s29, 0
      %p215 = por %p213, %p214
      %p216 = scmp.ne.s32.totalorder %s208, %s210
      %p217 = scmp.eq.s32.totalorder %s34, 1
      %p218 = por %p216, %p217
      %p219 = scmp.ne.s32.totalorder %s210, %s211
      %p220 = scmp.eq.s32.totalorder %s34, 0
      %p221 = por %p219, %p220
      %p222 = scmp.ne.s32.totalorder %s210, %s211
      %p223 = scmp.eq.s32.totalorder %s35, 1
      %p224 = por %p222, %p223
      %p226 = scmp.ne.s32.totalorder %s211, %s225
      %p227 = scmp.eq.s32.totalorder %s35, 0
      %p228 = por %p226, %p227
      %s230 = sadd.s32 %s229, 1
      %p233 = scmp.eq.s32.totalorder %s29, 1
      %p234 = scmp.ne.s32.totalorder %s229, %s231
      %p235 = scmp.eq.s32.totalorder %s29, 0
      %p236 = por %p234, %p235
      %p237 = scmp.ne.s32.totalorder %s229, %s231
      %p238 = scmp.eq.s32.totalorder %s34, 1
      %p239 = por %p237, %p238
      %p240 = scmp.ne.s32.totalorder %s231, %s232
      %p241 = scmp.eq.s32.totalorder %s34, 0
      %p242 = por %p240, %p241
      %p243 = scmp.ne.s32.totalorder %s231, %s232
      %p244 = scmp.eq.s32.totalorder %s35, 1
      %p245 = por %p243, %p244
      %p247 = scmp.ne.s32.totalorder %s232, %s246
      %p248 = scmp.eq.s32.totalorder %s35, 0
      %p249 = por %p247, %p248
      %s251 = sadd.s32 %s250, 1
      %p254 = scmp.eq.s32.totalorder %s29, 1
      %p255 = scmp.ne.s32.totalorder %s250, %s252
      %p256 = scmp.eq.s32.totalorder %s29, 0
      %p257 = por %p255, %p256
      %p258 = scmp.ne.s32.totalorder %s250, %s252
      %p259 = scmp.eq.s32.totalorder %s34, 1
      %p260 = por %p258, %p259
      %p261 = scmp.ne.s32.totalorder %s252, %s253
      %p262 = scmp.eq.s32.totalorder %s34, 0
      %p263 = por %p261, %p262
      %p264 = scmp.ne.s32.totalorder %s252, %s253
      %p265 = scmp.eq.s32.totalorder %s35, 1
      %p266 = por %p264, %p265
      %p268 = scmp.ne.s32.totalorder %s253, %s267
      %p269 = scmp.eq.s32.totalorder %s35, 0
      %p270 = por %p268, %p269
      %s272 = sadd.s32 %s271, 1
      %p275 = scmp.eq.s32.totalorder %s29, 1
      %p276 = scmp.ne.s32.totalorder %s271, %s273
      %p277 = scmp.eq.s32.totalorder %s29, 0
      %p278 = por %p276, %p277
      %p279 = scmp.ne.s32.totalorder %s271, %s273
      %p280 = scmp.eq.s32.totalorder %s34, 1
      %p281 = por %p279, %p280
      %p282 = scmp.ne.s32.totalorder %s273, %s274
      %p283 = scmp.eq.s32.totalorder %s34, 0
      %p284 = por %p282, %p283
      %p285 = scmp.ne.s32.totalorder %s273, %s274
      %p286 = scmp.eq.s32.totalorder %s35, 1
      %p287 = por %p285, %p286
      %p289 = scmp.ne.s32.totalorder %s274, %s288
      %p290 = scmp.eq.s32.totalorder %s35, 0
      %p291 = por %p289, %p290
      %s293 = sadd.s32 %s292, 1
      %p296 = scmp.eq.s32.totalorder %s29, 1
      %p297 = scmp.ne.s32.totalorder %s292, %s294
      %p298 = scmp.eq.s32.totalorder %s29, 0
      %p299 = por %p297, %p298
      %p300 = scmp.ne.s32.totalorder %s292, %s294
      %p301 = scmp.eq.s32.totalorder %s34, 1
      %p302 = por %p300, %p301
      %p303 = scmp.ne.s32.totalorder %s294, %s295
      %p304 = scmp.eq.s32.totalorder %s34, 0
      %p305 = por %p303, %p304
      %p306 = scmp.ne.s32.totalorder %s294, %s295
      %p307 = scmp.eq.s32.totalorder %s35, 1
      %p308 = por %p306, %p307
      %p310 = scmp.ne.s32.totalorder %s295, %s309
      %p311 = scmp.eq.s32.totalorder %s35, 0
      %p312 = por %p310, %p311
      %s313 = ssub.s32 %s36, %s48
      %s314 = ssub.s32 %s37, %s44
      %s315 = sor.u32 %s313, %s314
      %p316 = scmp.eq.s32.totalorder %s315, 0
      %s318 = sadd.s32 %s317, 1
      %s319 = scalar_select %p316, %s317, %s318
      %p322 = pneg %p316
      %p323 = scmp.eq.s32.totalorder %s29, 1
      %p324 = por %p322, %p323
      %p325 = scmp.ne.s32.totalorder %s317, %s320
      %p326 = scmp.eq.s32.totalorder %s29, 0
      %p327 = por %p325, %p326
      %p328 = scmp.ne.s32.totalorder %s317, %s320
      %p329 = scmp.eq.s32.totalorder %s34, 1
      %p330 = por %p328, %p329
      %p331 = scmp.ne.s32.totalorder %s320, %s321
      %p332 = scmp.eq.s32.totalorder %s34, 0
      %p333 = por %p331, %p332
      %p334 = scmp.ne.s32.totalorder %s320, %s321
      %p335 = scmp.eq.s32.totalorder %s35, 1
      %p336 = por %p334, %p335
      %p338 = scmp.ne.s32.totalorder %s321, %s337
      %p339 = scmp.eq.s32.totalorder %s35, 0
      %p340 = por %p338, %p339
      %p341 = scmp.le.s32.totalorder 1, %s29
      %p342 = scmp.lt.s32.totalorder %s29, 3
      %p343 = pnand %p341, %p342
      %p344 = pneg %p343
      // Predicated region
      $region9: #{tpu_custom_call.1} parent=5 // pred_check
        _
      $region10: #{tpu_custom_call.1} parent=5 // pred_check_branch
        %346 = sbr.rel (%p343) target = $region12
      $region11: #{tpu_custom_call.1} parent=5 // pred_region
        %s347 = ssub.s32 %s29, 1
        // Predicated region
        $region13: #{tpu_custom_call.1} parent=11 // pred_check
          %p348 = pneg %p116
        $region14: #{tpu_custom_call.1} parent=11 // pred_check_branch
          %350 = sbr.rel (%p348) target = $region16
        $region15: #{tpu_custom_call.1} parent=11 // pred_region
          %s352 = ssub.s32 512, 512
          %353 = vsyncadd [#allocation9], %s352
          %s354 = sshll.u32 [#allocation10], 4
          %s355 = int_to_ptr.vmem [resolvable:$true] %s354
          %360 = dma.hbm_to_vmem [thread:$0]  %s2, 512, %s355, [#allocation9], 128, 128, 8
        $region16: #{tpu_custom_call.1} parent=11 // pred_fallthru
          _
        // Predicated region
        $region17: #{tpu_custom_call.1} parent=11 // pred_check
          %p361 = pneg %p137
        $region18: #{tpu_custom_call.1} parent=11 // pred_check_branch
          %363 = sbr.rel (%p361) target = $region20
        $region19: #{tpu_custom_call.1} parent=11 // pred_region
          _
        $region20: #{tpu_custom_call.1} parent=11 // pred_fallthru
          _
        // Predicated region
        $region21: #{tpu_custom_call.1} parent=11 // pred_check
          %p364 = pneg %p158
        $region22: #{tpu_custom_call.1} parent=11 // pred_check_branch
          %366 = sbr.rel (%p364) target = $region24
        $region23: #{tpu_custom_call.1} parent=11 // pred_region
          %s368 = ssub.s32 512, 512
          %369 = vsyncadd [#allocation12], %s368
          %s370 = sshll.u32 [#allocation11], 4
          %s371 = int_to_ptr.vmem [resolvable:$true] %s370
          %376 = dma.hbm_to_vmem [thread:$0]  %s4, 512, %s371, [#allocation12], 128, 128, 8
        $region24: #{tpu_custom_call.1} parent=11 // pred_fallthru
          _
        // Predicated region
        $region25: #{tpu_custom_call.1} parent=11 // pred_check
          %p377 = pneg %p179
        $region26: #{tpu_custom_call.1} parent=11 // pred_check_branch
          %379 = sbr.rel (%p377) target = $region28
        $region27: #{tpu_custom_call.1} parent=11 // pred_region
          _
        $region28: #{tpu_custom_call.1} parent=11 // pred_fallthru
          _
        // Predicated region
        $region29: #{tpu_custom_call.1} parent=11 // pred_check
          %p380 = pneg %p200
        $region30: #{tpu_custom_call.1} parent=11 // pred_check_branch
          %382 = sbr.rel (%p380) target = $region32
        $region31: #{tpu_custom_call.1} parent=11 // pred_region
          %s384 = ssub.s32 512, 512
          %385 = vsyncadd [#allocation12], %s384
          %s386 = sshll.u32 [#allocation13], 4
          %s387 = int_to_ptr.vmem [resolvable:$true] %s386
          %392 = dma.hbm_to_vmem [thread:$0]  %s6, 512, %s387, [#allocation12], 128, 128, 8
        $region32: #{tpu_custom_call.1} parent=11 // pred_fallthru
          _
        // Predicated region
        $region33: #{tpu_custom_call.1} parent=11 // pred_check
          %p393 = pneg %p221
        $region34: #{tpu_custom_call.1} parent=11 // pred_check_branch
          %395 = sbr.rel (%p393) target = $region36
        $region35: #{tpu_custom_call.1} parent=11 // pred_region
          _
        $region36: #{tpu_custom_call.1} parent=11 // pred_fallthru
          _
        // Predicated region
        $region37: #{tpu_custom_call.1} parent=11 // pred_check
          %p396 = pneg %p242
        $region38: #{tpu_custom_call.1} parent=11 // pred_check_branch
          %398 = sbr.rel (%p396) target = $region40
        $region39: #{tpu_custom_call.1} parent=11 // pred_region
          %s400 = ssub.s32 512, 512
          %401 = vsyncadd [#allocation15], %s400
          %s402 = sshll.u32 [#allocation14], 4
          %s403 = int_to_ptr.vmem [resolvable:$true] %s402
          %408 = dma.hbm_to_vmem [thread:$0]  %s8, 512, %s403, [#allocation15], 128, 128, 8
        $region40: #{tpu_custom_call.1} parent=11 // pred_fallthru
          _
        // Predicated region
        $region41: #{tpu_custom_call.1} parent=11 // pred_check
          %p409 = pneg %p263
        $region42: #{tpu_custom_call.1} parent=11 // pred_check_branch
          %411 = sbr.rel (%p409) target = $region44
        $region43: #{tpu_custom_call.1} parent=11 // pred_region
          _
        $region44: #{tpu_custom_call.1} parent=11 // pred_fallthru
          _
        // Predicated region
        $region45: #{tpu_custom_call.1} parent=11 // pred_check
          %p412 = pneg %p284
        $region46: #{tpu_custom_call.1} parent=11 // pred_check_branch
          %414 = sbr.rel (%p412) target = $region48
        $region47: #{tpu_custom_call.1} parent=11 // pred_region
          _
        $region48: #{tpu_custom_call.1} parent=11 // pred_fallthru
          _
        // Predicated region
        $region49: #{tpu_custom_call.1} parent=11 // pred_check
          %p415 = pneg %p305
        $region50: #{tpu_custom_call.1} parent=11 // pred_check_branch
          %417 = sbr.rel (%p415) target = $region52
        $region51: #{tpu_custom_call.1} parent=11 // pred_region
          _
        $region52: #{tpu_custom_call.1} parent=11 // pred_fallthru
          _
      $region12: #{tpu_custom_call.1} parent=5 // pred_fallthru
        _
      %p418 = scmp.lt.s32.totalorder %s29, 2
      // Predicated region
      $region53: #{tpu_custom_call.1} parent=5 // pred_check
        %p419 = pneg %p418
      $region54: #{tpu_custom_call.1} parent=5 // pred_check_branch
        %421 = sbr.rel (%p419) target = $region56
      $region55: #{tpu_custom_call.1} parent=5 // pred_region
        // Predicated region
        $region57: #{tpu_custom_call.1} parent=55 // pred_check
          %p422 = pneg %p61
        $region58: #{tpu_custom_call.1} parent=55 // pred_check_branch
          %424 = sbr.rel (%p422) target = $region60
        $region59: #{tpu_custom_call.1} parent=55 // pred_region
          %s425 = sand.u32 %s51, 1
          %s426 = scalar_lea.sflag [#allocation6], %s425
          %s427 = sand.u32 %s51, 1
          %s428 = smul.addr %s427, 8
          %s429 = scalar_lea.vmem [#allocation5], %s428
          %s431 = ssub.s32 128, 128
          %432 = vsyncadd %s426, %s431
          %s433 = smul.addr %s36, 128
          %s434 = scalar_lea.hbm %s0, %s433
          %s436 = sshll.u32 %s429, 4
          %s437 = int_to_ptr.vmem [resolvable:$true] %s436
          %439 = dma.hbm_to_vmem [thread:$0]  %s434, 128, %s437, %s426
        $region60: #{tpu_custom_call.1} parent=55 // pred_fallthru
          _
        // Predicated region
        $region61: #{tpu_custom_call.1} parent=55 // pred_check
          %p440 = pneg %p89
        $region62: #{tpu_custom_call.1} parent=55 // pred_check_branch
          %442 = sbr.rel (%p440) target = $region64
        $region63: #{tpu_custom_call.1} parent=55 // pred_region
          %s443 = sand.u32 %s29, 1
          %s444 = scalar_lea.sflag [#allocation9], %s443
          %s445 = sand.u32 %s79, 1
          %s446 = smul.addr %s445, 8
          %s447 = scalar_lea.vmem [#allocation8], %s446
          %s449 = ssub.s32 128, 128
          %450 = vsyncadd %s444, %s449
          %s451 = sadd.s32 %s37, %s36
          %s452 = smul.addr %s451, 128
          %s453 = scalar_lea.hbm %s1, %s452
          %s455 = sshll.u32 %s447, 4
          %s456 = int_to_ptr.vmem [resolvable:$true] %s455
          %458 = dma.hbm_to_vmem [thread:$0]  %s453, 128, %s456, %s444
        $region64: #{tpu_custom_call.1} parent=55 // pred_fallthru
          _
      $region56: #{tpu_custom_call.1} parent=5 // pred_fallthru
        _
      %p459 = scmp.le.s32.totalorder 1, %s29
      %p460 = scmp.lt.s32.totalorder %s29, 3
      %p461 = pnand %p459, %p460
      %p462 = pneg %p461
      // Predicated region
      $region65: #{tpu_custom_call.1} parent=5 // pred_check
        _
      $region66: #{tpu_custom_call.1} parent=5 // pred_check_branch
        %464 = sbr.rel (%p461) target = $region68
      $region67: #{tpu_custom_call.1} parent=5 // pred_region
        %s465 = ssub.s32 %s29, 1
        %s466 = sand.u32 %s54, 1
        %s467 = scalar_lea.sflag [#allocation6], %s466
        %s468 = sand.u32 %s54, 1
        %s469 = smul.addr %s468, 8
        %s470 = scalar_lea.vmem [#allocation5], %s469
        // Predicated region
        $region69: #{tpu_custom_call.1} parent=67 // pred_check
          %p471 = pneg %p67
        $region70: #{tpu_custom_call.1} parent=67 // pred_check_branch
          %473 = sbr.rel (%p471) target = $region72
        $region71: #{tpu_custom_call.1} parent=67 // pred_region
          %474 = dma.done %s467, 128
        $region72: #{tpu_custom_call.1} parent=67 // pred_fallthru
          _
        %s475 = sand.u32 %s34, 1
        %s476 = scalar_lea.sflag [#allocation9], %s475
        %s477 = sand.u32 %s82, 1
        %s478 = smul.addr %s477, 8
        %s479 = scalar_lea.vmem [#allocation8], %s478
        // Predicated region
        $region73: #{tpu_custom_call.1} parent=67 // pred_check
          %p480 = pneg %p95
        $region74: #{tpu_custom_call.1} parent=67 // pred_check_branch
          %482 = sbr.rel (%p480) target = $region76
        $region75: #{tpu_custom_call.1} parent=67 // pred_region
          %483 = dma.done %s476, 128
        $region76: #{tpu_custom_call.1} parent=67 // pred_fallthru
          _
        // Predicated region
        $region77: #{tpu_custom_call.1} parent=67 // pred_check
          %p484 = pneg %p116
        $region78: #{tpu_custom_call.1} parent=67 // pred_check_branch
          %486 = sbr.rel (%p484) target = $region80
        $region79: #{tpu_custom_call.1} parent=67 // pred_region
          %487 = dma.done [#allocation9], 512
        $region80: #{tpu_custom_call.1} parent=67 // pred_fallthru
          _
        // Predicated region
        $region81: #{tpu_custom_call.1} parent=67 // pred_check
          %p488 = pneg %p158
        $region82: #{tpu_custom_call.1} parent=67 // pred_check_branch
          %490 = sbr.rel (%p488) target = $region84
        $region83: #{tpu_custom_call.1} parent=67 // pred_region
          %491 = dma.done [#allocation12], 512
        $region84: #{tpu_custom_call.1} parent=67 // pred_fallthru
          _
        // Predicated region
        $region85: #{tpu_custom_call.1} parent=67 // pred_check
          %p492 = pneg %p200
        $region86: #{tpu_custom_call.1} parent=67 // pred_check_branch
          %494 = sbr.rel (%p492) target = $region88
        $region87: #{tpu_custom_call.1} parent=67 // pred_region
          %495 = dma.done [#allocation12], 512
        $region88: #{tpu_custom_call.1} parent=67 // pred_fallthru
          _
        // Predicated region
        $region89: #{tpu_custom_call.1} parent=67 // pred_check
          %p496 = pneg %p242
        $region90: #{tpu_custom_call.1} parent=67 // pred_check_branch
          %498 = sbr.rel (%p496) target = $region92
        $region91: #{tpu_custom_call.1} parent=67 // pred_region
          %499 = dma.done [#allocation15], 512
        $region92: #{tpu_custom_call.1} parent=67 // pred_fallthru
          _
        %s500 = sand.u32 %s54, 1
        %s501 = scalar_lea.sflag [#allocation6], %s500
        %s502 = sand.u32 %s54, 1
        %s503 = smul.addr %s502, 8
        %s504 = scalar_lea.vmem [#allocation5], %s503
        %p505 = pneg %p67
        %p506 = pneg %p64
        %s507 = sand.u32 %s34, 1
        %s508 = scalar_lea.sflag [#allocation9], %s507
        %s509 = sand.u32 %s82, 1
        %s510 = smul.addr %s509, 8
        %s511 = scalar_lea.vmem [#allocation8], %s510
        %p512 = pneg %p95
        %p513 = pneg %p92
        %p514 = pneg %p116
        %p515 = pneg %p113
        %p516 = pneg %p137
        %p517 = pneg %p134
        %p518 = pneg %p158
        %p519 = pneg %p155
        %p520 = pneg %p179
        %p521 = pneg %p176
        %p522 = pneg %p200
        %p523 = pneg %p197
        %p524 = pneg %p221
        %p525 = pneg %p218
        %p526 = pneg %p242
        %p527 = pneg %p239
        %p528 = pneg %p263
        %p529 = pneg %p260
        %p530 = pneg %p284
        %p531 = pneg %p281
        %p532 = pneg %p305
        %p533 = pneg %p302
        %p534 = pneg %p333
        %p535 = pneg %p330
        %s536 = sand.u32 %s320, 1
        %s537 = scalar_lea.sflag [#allocation7], %s536
        %s538 = sand.u32 %s320, 1
        %s539 = smul.addr %s538, 8
        %s540 = scalar_lea.vmem [#allocation16], %s539
        %p541 = scmp.eq.s32.totalorder %s39, 0
        // Predicated region
        $region93: #{tpu_custom_call.1} parent=67 // pred_check
          %p542 = pneg %p541
        $region94: #{tpu_custom_call.1} parent=67 // pred_check_branch
          %544 = sbr.rel (%p542) target = $region96
        $region95: #{tpu_custom_call.1} parent=67 // pred_region
          %v545 = vld [vmem:[%s470] sm:$0xff]
          %v546 = vld [vmem:[#allocation11] sm:$0xff]
          %v547 = vld [vmem:[#allocation11 + $0x8] sm:$0xff]
          %v548 = vld [vmem:[#allocation11 + $0x10] sm:$0xff]
          %v549 = vld [vmem:[#allocation11 + $0x18] sm:$0xff]
          %v550 = vld [vmem:[%s5] sm:$0x1]
          %v552 = vlaneseq
          %v553 = vshrl.u32 %v552, 7
          %v554 = vsub.s32 0, %v553
          %v555 = vrot.slane %v550, %v554
          %vm557 = vcmask 261120
          %v559 = vsel %vm557, %v545, 0
          %561 = vmatprep.subr.mxu0 0.0
          %562 = vmatpush1.msra.mxu0 %v546
          %563 = vmatprep.subr.mxu0 0.0
          %564 = vmatpush1.msra.mxu0 %v547
          %565 = vmatprep.subr.mxu0 0.0
          %566 = vmatpush1.msra.mxu0 %v548
          %567 = vmatprep.subr.mxu0 0.0
          %568 = vmatpush1.msra.mxu0 %v549
          %569 = vmatprep.subr.mxu0 0.0
          %570 = vmatpush1.msra.mxu0 0.0
          %571 = vmatprep.subr.mxu0 0.0
          %572 = vmatpush1.msra.mxu0 0.0
          %573 = vmatprep.subr.mxu0 0.0
          %574 = vmatpush1.msra.mxu0 0.0
          %575 = vmatprep.subr.mxu0 0.0
          %576 = vmatpush1.msra.mxu0 0.0
          %577 = vmatprep.subr.mxu0 0.0
          %578 = vmatpush1.msra.mxu0 0.0
          %579 = vmatprep.subr.mxu0 0.0
          %580 = vmatpush1.msra.mxu0 0.0
          %581 = vmatprep.subr.mxu0 0.0
          %582 = vmatpush1.msra.mxu0 0.0
          %583 = vmatprep.subr.mxu0 0.0
          %584 = vmatpush1.msra.mxu0 0.0
          %585 = vmatprep.subr.mxu0 0.0
          %586 = vmatpush1.msra.mxu0 0.0
          %587 = vmatprep.subr.mxu0 0.0
          %588 = vmatpush1.msra.mxu0 0.0
          %589 = vmatprep.subr.mxu0 0.0
          %590 = vmatpush1.msra.mxu0 0.0
          %591 = vmatprep.subr.mxu0 0.0
          %592 = vmatpush1.msra.mxu0 0.0
          %593 = vmatprep.subr.mxu0 0.0
          %594 = vmatpush1.msra.mxu0 0.0
          %595 = vmatprep.subr.mxu0 0.0
          %596 = vmatpush1.msra.mxu0 0.0
          %597 = vmatprep.subr.mxu0 0.0
          %598 = vmatpush1.msra.mxu0 0.0
          %599 = vmatprep.subr.mxu0 0.0
          %600 = vmatpush1.msra.mxu0 0.0
          %601 = vmatprep.subr.mxu0 0.0
          %602 = vmatpush1.msra.mxu0 0.0
          %603 = vmatprep.subr.mxu0 0.0
          %604 = vmatpush1.msra.mxu0 0.0
          %605 = vmatprep.subr.mxu0 0.0
          %606 = vmatpush1.msra.mxu0 0.0
          %607 = vmatprep.subr.mxu0 0.0
          %608 = vmatpush1.msra.mxu0 0.0
          %609 = vmatprep.subr.mxu0 0.0
          %610 = vmatpush1.msra.mxu0 0.0
          %611 = vmatprep.subr.mxu0 0.0
          %612 = vmatpush1.msra.mxu0 0.0
          %613 = vmatprep.subr.mxu0 0.0
          %614 = vmatpush1.msra.mxu0 0.0
          %615 = vmatprep.subr.mxu0 0.0
          %616 = vmatpush1.msra.mxu0 0.0
          %617 = vmatprep.subr.mxu0 0.0
          %618 = vmatpush1.msra.mxu0 0.0
          %619 = vmatprep.subr.mxu0 0.0
          %620 = vmatpush1.msra.mxu0 0.0
          %621 = vmatprep.subr.mxu0 0.0
          %622 = vmatpush1.msra.mxu0 0.0
          %623 = vmatprep.subr.mxu0 0.0
          %624 = vmatpush1.msra.mxu0 0.0
          %625 = vmatprep.mubr.f32.mxu0 0.0
          %626 = vmatmul.mubr.f32.gmra.mrb[0].mxu0 %v559
          %v627 = vpop.f32.mrb[0].mxu0
          %v628 = vadd.f32 %v555, %v627
          %v629 = vpop.f32.mrb[0].mxu0
          %630 = vdwg.mxu0
          %v631 = vld [vmem:[#allocation13] sm:$0xff]
          %v632 = vld [vmem:[#allocation13 + $0x8] sm:$0xff]
          %v633 = vld [vmem:[#allocation13 + $0x10] sm:$0xff]
          %v634 = vld [vmem:[#allocation13 + $0x18] sm:$0xff]
          %v635 = vld [vmem:[%s7] sm:$0x1]
          %v637 = vlaneseq
          %v638 = vshrl.u32 %v637, 7
          %v639 = vsub.s32 0, %v638
          %v640 = vrot.slane %v635, %v639
          %642 = vmatprep.subr.mxu0 0.0
          %643 = vmatpush1.msra.mxu0 %v631
          %644 = vmatprep.subr.mxu0 0.0
          %645 = vmatpush1.msra.mxu0 %v632
          %646 = vmatprep.subr.mxu0 0.0
          %647 = vmatpush1.msra.mxu0 %v633
          %648 = vmatprep.subr.mxu0 0.0
          %649 = vmatpush1.msra.mxu0 %v634
          %650 = vmatprep.subr.mxu0 0.0
          %651 = vmatpush1.msra.mxu0 0.0
          %652 = vmatprep.subr.mxu0 0.0
          %653 = vmatpush1.msra.mxu0 0.0
          %654 = vmatprep.subr.mxu0 0.0
          %655 = vmatpush1.msra.mxu0 0.0
          %656 = vmatprep.subr.mxu0 0.0
          %657 = vmatpush1.msra.mxu0 0.0
          %658 = vmatprep.subr.mxu0 0.0
          %659 = vmatpush1.msra.mxu0 0.0
          %660 = vmatprep.subr.mxu0 0.0
          %661 = vmatpush1.msra.mxu0 0.0
          %662 = vmatprep.subr.mxu0 0.0
          %663 = vmatpush1.msra.mxu0 0.0
          %664 = vmatprep.subr.mxu0 0.0
          %665 = vmatpush1.msra.mxu0 0.0
          %666 = vmatprep.subr.mxu0 0.0
          %667 = vmatpush1.msra.mxu0 0.0
          %668 = vmatprep.subr.mxu0 0.0
          %669 = vmatpush1.msra.mxu0 0.0
          %670 = vmatprep.subr.mxu0 0.0
          %671 = vmatpush1.msra.mxu0 0.0
          %672 = vmatprep.subr.mxu0 0.0
          %673 = vmatpush1.msra.mxu0 0.0
          %674 = vmatprep.subr.mxu0 0.0
          %675 = vmatpush1.msra.mxu0 0.0
          %676 = vmatprep.subr.mxu0 0.0
          %677 = vmatpush1.msra.mxu0 0.0
          %678 = vmatprep.subr.mxu0 0.0
          %679 = vmatpush1.msra.mxu0 0.0
          %680 = vmatprep.subr.mxu0 0.0
          %681 = vmatpush1.msra.mxu0 0.0
          %682 = vmatprep.subr.mxu0 0.0
          %683 = vmatpush1.msra.mxu0 0.0
          %684 = vmatprep.subr.mxu0 0.0
          %685 = vmatpush1.msra.mxu0 0.0
          %686 = vmatprep.subr.mxu0 0.0
          %687 = vmatpush1.msra.mxu0 0.0
          %688 = vmatprep.subr.mxu0 0.0
          %689 = vmatpush1.msra.mxu0 0.0
          %690 = vmatprep.subr.mxu0 0.0
          %691 = vmatpush1.msra.mxu0 0.0
          %692 = vmatprep.subr.mxu0 0.0
          %693 = vmatpush1.msra.mxu0 0.0
          %694 = vmatprep.subr.mxu0 0.0
          %695 = vmatpush1.msra.mxu0 0.0
          %696 = vmatprep.subr.mxu0 0.0
          %697 = vmatpush1.msra.mxu0 0.0
          %698 = vmatprep.subr.mxu0 0.0
          %699 = vmatpush1.msra.mxu0 0.0
          %700 = vmatprep.subr.mxu0 0.0
          %701 = vmatpush1.msra.mxu0 0.0
          %702 = vmatprep.subr.mxu0 0.0
          %703 = vmatpush1.msra.mxu0 0.0
          %704 = vmatprep.subr.mxu0 0.0
          %705 = vmatpush1.msra.mxu0 0.0
          %706 = vmatprep.mubr.f32.mxu0 0.0
          %707 = vmatmul.mubr.f32.gmra.mrb[0].mxu0 %v559
          %v708 = vpop.f32.mrb[0].mxu0
          %v709 = vadd.f32 %v640, %v708
          %v710 = vpop.f32.mrb[0].mxu0
          %711 = vdwg.mxu0
          %712 = vst.msk [vmem:[#allocation2] sm:$0xff] %vm557, %v628
          %713 = vst.msk [vmem:[#allocation3] sm:$0xff] %vm557, %v709
        $region96: #{tpu_custom_call.1} parent=67 // pred_fallthru
          _
        %v714 = vld [vmem:[%s479] sm:$0xff]
        %v715 = vld [vmem:[#allocation10] sm:$0xff]
        %v716 = vld [vmem:[#allocation10 + $0x8] sm:$0xff]
        %v717 = vld [vmem:[#allocation10 + $0x10] sm:$0xff]
        %v718 = vld [vmem:[#allocation10 + $0x18] sm:$0xff]
        %v719 = vld [vmem:[%s3] sm:$0x1]
        %v721 = vlaneseq
        %v722 = vshrl.u32 %v721, 7
        %v723 = vsub.s32 0, %v722
        %v724 = vrot.slane %v719, %v723
        %vm726 = vcmask 261120
        %v728 = vsel %vm726, %v714, 0
        %730 = vmatprep.subr.mxu0 0.0
        %731 = vmatpush1.msra.mxu0 %v715
        %732 = vmatprep.subr.mxu0 0.0
        %733 = vmatpush1.msra.mxu0 %v716
        %734 = vmatprep.subr.mxu0 0.0
        %735 = vmatpush1.msra.mxu0 %v717
        %736 = vmatprep.subr.mxu0 0.0
        %737 = vmatpush1.msra.mxu0 %v718
        %738 = vmatprep.subr.mxu0 0.0
        %739 = vmatpush1.msra.mxu0 0.0
        %740 = vmatprep.subr.mxu0 0.0
        %741 = vmatpush1.msra.mxu0 0.0
        %742 = vmatprep.subr.mxu0 0.0
        %743 = vmatpush1.msra.mxu0 0.0
        %744 = vmatprep.subr.mxu0 0.0
        %745 = vmatpush1.msra.mxu0 0.0
        %746 = vmatprep.subr.mxu0 0.0
        %747 = vmatpush1.msra.mxu0 0.0
        %748 = vmatprep.subr.mxu0 0.0
        %749 = vmatpush1.msra.mxu0 0.0
        %750 = vmatprep.subr.mxu0 0.0
        %751 = vmatpush1.msra.mxu0 0.0
        %752 = vmatprep.subr.mxu0 0.0
        %753 = vmatpush1.msra.mxu0 0.0
        %754 = vmatprep.subr.mxu0 0.0
        %755 = vmatpush1.msra.mxu0 0.0
        %756 = vmatprep.subr.mxu0 0.0
        %757 = vmatpush1.msra.mxu0 0.0
        %758 = vmatprep.subr.mxu0 0.0
        %759 = vmatpush1.msra.mxu0 0.0
        %760 = vmatprep.subr.mxu0 0.0
        %761 = vmatpush1.msra.mxu0 0.0
        %762 = vmatprep.subr.mxu0 0.0
        %763 = vmatpush1.msra.mxu0 0.0
        %764 = vmatprep.subr.mxu0 0.0
        %765 = vmatpush1.msra.mxu0 0.0
        %766 = vmatprep.subr.mxu0 0.0
        %767 = vmatpush1.msra.mxu0 0.0
        %768 = vmatprep.subr.mxu0 0.0
        %769 = vmatpush1.msra.mxu0 0.0
        %770 = vmatprep.subr.mxu0 0.0
        %771 = vmatpush1.msra.mxu0 0.0
        %772 = vmatprep.subr.mxu0 0.0
        %773 = vmatpush1.msra.mxu0 0.0
        %774 = vmatprep.subr.mxu0 0.0
        %775 = vmatpush1.msra.mxu0 0.0
        %776 = vmatprep.subr.mxu0 0.0
        %777 = vmatpush1.msra.mxu0 0.0
        %778 = vmatprep.subr.mxu0 0.0
        %779 = vmatpush1.msra.mxu0 0.0
        %780 = vmatprep.subr.mxu0 0.0
        %781 = vmatpush1.msra.mxu0 0.0
        %782 = vmatprep.subr.mxu0 0.0
        %783 = vmatpush1.msra.mxu0 0.0
        %784 = vmatprep.subr.mxu0 0.0
        %785 = vmatpush1.msra.mxu0 0.0
        %786 = vmatprep.subr.mxu0 0.0
        %787 = vmatpush1.msra.mxu0 0.0
        %788 = vmatprep.subr.mxu0 0.0
        %789 = vmatpush1.msra.mxu0 0.0
        %790 = vmatprep.subr.mxu0 0.0
        %791 = vmatpush1.msra.mxu0 0.0
        %792 = vmatprep.subr.mxu0 0.0
        %793 = vmatpush1.msra.mxu0 0.0
        %794 = vmatprep.mubr.f32.mxu0 0.0
        %795 = vmatmul.mubr.f32.gmra.mrb[0].mxu0 %v728
        %v796 = vpop.f32.mrb[0].mxu0
        %v797 = vadd.f32 %v724, %v796
        %v798 = vpop.f32.mrb[0].mxu0
        %799 = vdwg.mxu0
        %v800 = vld [vmem:[#allocation2] sm:$0xff]
        %v801 = vld [vmem:[#allocation3] sm:$0xff]
        %v803 = vsel %vm726, %v797, 0
        %v806 = vsel %vm726, %v800, 0
        %808 = vmatprep.subr.mxu0 0.0
        %809 = vmatpush1.xpose.msra.mxu0 %v806
        %810 = vmatprep.subr.mxu0 0.0
        %811 = vmatpush1.xpose.msra.mxu0 0.0
        %812 = vmatprep.subr.mxu0 0.0
        %813 = vmatpush1.xpose.msra.mxu0 0.0
        %814 = vmatprep.subr.mxu0 0.0
        %815 = vmatpush1.xpose.msra.mxu0 0.0
        %816 = vmatprep.subr.mxu0 0.0
        %817 = vmatpush1.xpose.msra.mxu0 0.0
        %818 = vmatprep.subr.mxu0 0.0
        %819 = vmatpush1.xpose.msra.mxu0 0.0
        %820 = vmatprep.subr.mxu0 0.0
        %821 = vmatpush1.xpose.msra.mxu0 0.0
        %822 = vmatprep.subr.mxu0 0.0
        %823 = vmatpush1.xpose.msra.mxu0 0.0
        %824 = vmatprep.subr.mxu0 0.0
        %825 = vmatpush1.xpose.msra.mxu0 0.0
        %826 = vmatprep.subr.mxu0 0.0
        %827 = vmatpush1.xpose.msra.mxu0 0.0
        %828 = vmatprep.subr.mxu0 0.0
        %829 = vmatpush1.xpose.msra.mxu0 0.0
        %830 = vmatprep.subr.mxu0 0.0
        %831 = vmatpush1.xpose.msra.mxu0 0.0
        %832 = vmatprep.subr.mxu0 0.0
        %833 = vmatpush1.xpose.msra.mxu0 0.0
        %834 = vmatprep.subr.mxu0 0.0
        %835 = vmatpush1.xpose.msra.mxu0 0.0
        %836 = vmatprep.subr.mxu0 0.0
        %837 = vmatpush1.xpose.msra.mxu0 0.0
        %838 = vmatprep.subr.mxu0 0.0
        %839 = vmatpush1.xpose.msra.mxu0 0.0
        %840 = vmatprep.subr.mxu0 0.0
        %841 = vmatpush1.xpose.msra.mxu0 0.0
        %842 = vmatprep.subr.mxu0 0.0
        %843 = vmatpush1.xpose.msra.mxu0 0.0
        %844 = vmatprep.subr.mxu0 0.0
        %845 = vmatpush1.xpose.msra.mxu0 0.0
        %846 = vmatprep.subr.mxu0 0.0
        %847 = vmatpush1.xpose.msra.mxu0 0.0
        %848 = vmatprep.subr.mxu0 0.0
        %849 = vmatpush1.xpose.msra.mxu0 0.0
        %850 = vmatprep.subr.mxu0 0.0
        %851 = vmatpush1.xpose.msra.mxu0 0.0
        %852 = vmatprep.subr.mxu0 0.0
        %853 = vmatpush1.xpose.msra.mxu0 0.0
        %854 = vmatprep.subr.mxu0 0.0
        %855 = vmatpush1.xpose.msra.mxu0 0.0
        %856 = vmatprep.subr.mxu0 0.0
        %857 = vmatpush1.xpose.msra.mxu0 0.0
        %858 = vmatprep.subr.mxu0 0.0
        %859 = vmatpush1.xpose.msra.mxu0 0.0
        %860 = vmatprep.subr.mxu0 0.0
        %861 = vmatpush1.xpose.msra.mxu0 0.0
        %862 = vmatprep.subr.mxu0 0.0
        %863 = vmatpush1.xpose.msra.mxu0 0.0
        %864 = vmatprep.subr.mxu0 0.0
        %865 = vmatpush1.xpose.msra.mxu0 0.0
        %866 = vmatprep.subr.mxu0 0.0
        %867 = vmatpush1.xpose.msra.mxu0 0.0
        %868 = vmatprep.subr.mxu0 0.0
        %869 = vmatpush1.xpose.msra.mxu0 0.0
        %870 = vmatprep.subr.mxu0 0.0
        %871 = vmatpush1.xpose.msra.mxu0 0.0
        %872 = vmatprep.mubr.f32.mxu0 0.0
        %873 = vmatmul.mubr.f32.gmra.mrb[0].mxu0 %v803
        %v874 = vpop.f32.mrb[0].mxu0
        %v875 = vadd.f32 0.0, %v874
        %v876 = vpop.f32.mrb[0].mxu0
        %877 = vdwg.mxu0
        %vm878 = vcmask 64512
        %v879 = vsel %vm878, %v875, -inf
        %880 = vmax.xlane.f32.xlu0 %v879
        %v881 = vpop.xlane.xlu0 %880
        %v882 = vsub.f32 %v875, %v881
        %v883 = vmul.f32 %v882, 1.442695
        %v884 = vpow.pop %v883
        %v885 = vsel %vm878, %v884, 0.0
        %886 = vadd.xlane.f32.xlu0 %v885
        %v887 = vpop.xlane.xlu0 %886
        %v888 = vrcp.pop %v887
        %v889 = vmul.f32 %v884, %v888
        %v891 = vsel %vm878, %v889, 0
        %893 = vmatprep.subr.mxu0 0.0
        %894 = vmatpush1.msra.mxu0 %v801
        %895 = vmatprep.subr.mxu0 0.0
        %896 = vmatpush1.msra.mxu0 0.0
        %897 = vmatprep.subr.mxu0 0.0
        %898 = vmatpush1.msra.mxu0 0.0
        %899 = vmatprep.subr.mxu0 0.0
        %900 = vmatpush1.msra.mxu0 0.0
        %901 = vmatprep.subr.mxu0 0.0
        %902 = vmatpush1.msra.mxu0 0.0
        %903 = vmatprep.subr.mxu0 0.0
        %904 = vmatpush1.msra.mxu0 0.0
        %905 = vmatprep.subr.mxu0 0.0
        %906 = vmatpush1.msra.mxu0 0.0
        %907 = vmatprep.subr.mxu0 0.0
        %908 = vmatpush1.msra.mxu0 0.0
        %909 = vmatprep.subr.mxu0 0.0
        %910 = vmatpush1.msra.mxu0 0.0
        %911 = vmatprep.subr.mxu0 0.0
        %912 = vmatpush1.msra.mxu0 0.0
        %913 = vmatprep.subr.mxu0 0.0
        %914 = vmatpush1.msra.mxu0 0.0
        %915 = vmatprep.subr.mxu0 0.0
        %916 = vmatpush1.msra.mxu0 0.0
        %917 = vmatprep.subr.mxu0 0.0
        %918 = vmatpush1.msra.mxu0 0.0
        %919 = vmatprep.subr.mxu0 0.0
        %920 = vmatpush1.msra.mxu0 0.0
        %921 = vmatprep.subr.mxu0 0.0
        %922 = vmatpush1.msra.mxu0 0.0
        %923 = vmatprep.subr.mxu0 0.0
        %924 = vmatpush1.msra.mxu0 0.0
        %925 = vmatprep.subr.mxu0 0.0
        %926 = vmatpush1.msra.mxu0 0.0
        %927 = vmatprep.subr.mxu0 0.0
        %928 = vmatpush1.msra.mxu0 0.0
        %929 = vmatprep.subr.mxu0 0.0
        %930 = vmatpush1.msra.mxu0 0.0
        %931 = vmatprep.subr.mxu0 0.0
        %932 = vmatpush1.msra.mxu0 0.0
        %933 = vmatprep.subr.mxu0 0.0
        %934 = vmatpush1.msra.mxu0 0.0
        %935 = vmatprep.subr.mxu0 0.0
        %936 = vmatpush1.msra.mxu0 0.0
        %937 = vmatprep.subr.mxu0 0.0
        %938 = vmatpush1.msra.mxu0 0.0
        %939 = vmatprep.subr.mxu0 0.0
        %940 = vmatpush1.msra.mxu0 0.0
        %941 = vmatprep.subr.mxu0 0.0
        %942 = vmatpush1.msra.mxu0 0.0
        %943 = vmatprep.subr.mxu0 0.0
        %944 = vmatpush1.msra.mxu0 0.0
        %945 = vmatprep.subr.mxu0 0.0
        %946 = vmatpush1.msra.mxu0 0.0
        %947 = vmatprep.subr.mxu0 0.0
        %948 = vmatpush1.msra.mxu0 0.0
        %949 = vmatprep.subr.mxu0 0.0
        %950 = vmatpush1.msra.mxu0 0.0
        %951 = vmatprep.subr.mxu0 0.0
        %952 = vmatpush1.msra.mxu0 0.0
        %953 = vmatprep.subr.mxu0 0.0
        %954 = vmatpush1.msra.mxu0 0.0
        %955 = vmatprep.subr.mxu0 0.0
        %956 = vmatpush1.msra.mxu0 0.0
        %957 = vmatprep.mubr.f32.mxu0 0.0
        %958 = vmatmul.mubr.f32.gmra.mrb[0].mxu0 %v891
        %v959 = vpop.f32.mrb[0].mxu0
        %v960 = vadd.f32 0.0, %v959
        %v961 = vpop.f32.mrb[0].mxu0
        %962 = vdwg.mxu0
        %963 = vst.msk [vmem:[#allocation4] sm:$0xff] %vm726, %v960
        %v964 = vld [vmem:[#allocation4] sm:$0xff]
        %v965 = vld [vmem:[#allocation14] sm:$0xff]
        %v966 = vld [vmem:[#allocation14 + $0x8] sm:$0xff]
        %v967 = vld [vmem:[#allocation14 + $0x10] sm:$0xff]
        %v968 = vld [vmem:[#allocation14 + $0x18] sm:$0xff]
        %v969 = vld [vmem:[%s9] sm:$0x1]
        %v971 = vlaneseq
        %v972 = vshrl.u32 %v971, 7
        %v973 = vsub.s32 0, %v972
        %v974 = vrot.slane %v969, %v973
        %v977 = vsel %vm726, %v964, 0
        %979 = vmatprep.subr.mxu0 0.0
        %980 = vmatpush1.msra.mxu0 %v965
        %981 = vmatprep.subr.mxu0 0.0
        %982 = vmatpush1.msra.mxu0 %v966
        %983 = vmatprep.subr.mxu0 0.0
        %984 = vmatpush1.msra.mxu0 %v967
        %985 = vmatprep.subr.mxu0 0.0
        %986 = vmatpush1.msra.mxu0 %v968
        %987 = vmatprep.subr.mxu0 0.0
        %988 = vmatpush1.msra.mxu0 0.0
        %989 = vmatprep.subr.mxu0 0.0
        %990 = vmatpush1.msra.mxu0 0.0
        %991 = vmatprep.subr.mxu0 0.0
        %992 = vmatpush1.msra.mxu0 0.0
        %993 = vmatprep.subr.mxu0 0.0
        %994 = vmatpush1.msra.mxu0 0.0
        %995 = vmatprep.subr.mxu0 0.0
        %996 = vmatpush1.msra.mxu0 0.0
        %997 = vmatprep.subr.mxu0 0.0
        %998 = vmatpush1.msra.mxu0 0.0
        %999 = vmatprep.subr.mxu0 0.0
        %1000 = vmatpush1.msra.mxu0 0.0
        %1001 = vmatprep.subr.mxu0 0.0
        %1002 = vmatpush1.msra.mxu0 0.0
        %1003 = vmatprep.subr.mxu0 0.0
        %1004 = vmatpush1.msra.mxu0 0.0
        %1005 = vmatprep.subr.mxu0 0.0
        %1006 = vmatpush1.msra.mxu0 0.0
        %1007 = vmatprep.subr.mxu0 0.0
        %1008 = vmatpush1.msra.mxu0 0.0
        %1009 = vmatprep.subr.mxu0 0.0
        %1010 = vmatpush1.msra.mxu0 0.0
        %1011 = vmatprep.subr.mxu0 0.0
        %1012 = vmatpush1.msra.mxu0 0.0
        %1013 = vmatprep.subr.mxu0 0.0
        %1014 = vmatpush1.msra.mxu0 0.0
        %1015 = vmatprep.subr.mxu0 0.0
        %1016 = vmatpush1.msra.mxu0 0.0
        %1017 = vmatprep.subr.mxu0 0.0
        %1018 = vmatpush1.msra.mxu0 0.0
        %1019 = vmatprep.subr.mxu0 0.0
        %1020 = vmatpush1.msra.mxu0 0.0
        %1021 = vmatprep.subr.mxu0 0.0
        %1022 = vmatpush1.msra.mxu0 0.0
        %1023 = vmatprep.subr.mxu0 0.0
        %1024 = vmatpush1.msra.mxu0 0.0
        %1025 = vmatprep.subr.mxu0 0.0
        %1026 = vmatpush1.msra.mxu0 0.0
        %1027 = vmatprep.subr.mxu0 0.0
        %1028 = vmatpush1.msra.mxu0 0.0
        %1029 = vmatprep.subr.mxu0 0.0
        %1030 = vmatpush1.msra.mxu0 0.0
        %1031 = vmatprep.subr.mxu0 0.0
        %1032 = vmatpush1.msra.mxu0 0.0
        %1033 = vmatprep.subr.mxu0 0.0
        %1034 = vmatpush1.msra.mxu0 0.0
        %1035 = vmatprep.subr.mxu0 0.0
        %1036 = vmatpush1.msra.mxu0 0.0
        %1037 = vmatprep.subr.mxu0 0.0
        %1038 = vmatpush1.msra.mxu0 0.0
        %1039 = vmatprep.subr.mxu0 0.0
        %1040 = vmatpush1.msra.mxu0 0.0
        %1041 = vmatprep.subr.mxu0 0.0
        %1042 = vmatpush1.msra.mxu0 0.0
        %1043 = vmatprep.mubr.f32.mxu0 0.0
        %1044 = vmatmul.mubr.f32.gmra.mrb[0].mxu0 %v977
        %v1045 = vpop.f32.mrb[0].mxu0
        %v1046 = vadd.f32 %v974, %v1045
        %v1047 = vpop.f32.mrb[0].mxu0
        %1048 = vdwg.mxu0
        %v1049 = vadd.f32 %v1046, %v714
        %v1050 = vsel %vm726, %v1049, 0.0
        %1051 = vadd.xlane.f32.xlu0 %v1050
        %v1052 = vpop.xlane.xlu0 %1051
        %v1053 = vrcp.pop 32.0
        %v1054 = vmul.f32 %v1052, %v1053
        %v1055 = vsub.f32 %v1049, %v1054
        %v1056 = vmul.f32 %v1055, %v1055
        %v1057 = vsel %vm726, %v1056, 0.0
        %1058 = vadd.xlane.f32.xlu0 %v1057
        %v1059 = vpop.xlane.xlu0 %1058
        %v1060 = vmul.f32 %v1059, %v1053
        %v1061 = vadd.f32 %v1060, 1e-05
        %v1062 = vrsqrt.pop %v1061
        %v1063 = vmul.f32 %v1055, %v1062
        %v1064 = vld [vmem:[%s10] sm:$0x1]
        %v1066 = vlaneseq
        %v1067 = vshrl.u32 %v1066, 7
        %v1068 = vsub.s32 0, %v1067
        %v1069 = vrot.slane %v1064, %v1068
        %v1071 = vmul.f32 %v1063, %v1069
        %v1072 = vld [vmem:[%s11] sm:$0x1]
        %v1074 = vlaneseq
        %v1075 = vshrl.u32 %v1074, 7
        %v1076 = vsub.s32 0, %v1075
        %v1077 = vrot.slane %v1072, %v1076
        %v1079 = vadd.f32 %v1071, %v1077
        %1080 = vst.msk [vmem:[%s540] sm:$0xff] %vm726, %v1079
        %s1081 = sand.u32 %s320, 1
        %s1082 = scalar_lea.sflag [#allocation7], %s1081
        %s1083 = sand.u32 %s320, 1
        %s1084 = smul.addr %s1083, 8
        %s1085 = scalar_lea.vmem [#allocation16], %s1084
        // Predicated region
        $region97: #{tpu_custom_call.1} parent=67 // pred_check
          %p1086 = pneg %p330
        $region98: #{tpu_custom_call.1} parent=67 // pred_check_branch
          %1088 = sbr.rel (%p1086) target = $region100
        $region99: #{tpu_custom_call.1} parent=67 // pred_region
          %s1090 = ssub.s32 128, 128
          %1091 = vsyncadd %s1082, %s1090
          %s1092 = sadd.s32 %s39, %s38
          %s1093 = smul.addr %s1092, 128
          %s1094 = scalar_lea.hbm %s12, %s1093
          %s1096 = sshll.u32 %s1085, 4
          %s1097 = int_to_ptr.vmem [resolvable:$true] %s1096
          %1099 = dma.vmem_to_hbm [thread:$0]  %s1097, 128, %s1094, %s1082
        $region100: #{tpu_custom_call.1} parent=67 // pred_fallthru
          _
      $region68: #{tpu_custom_call.1} parent=5 // pred_fallthru
        _
      %p1100 = scmp.le.s32.totalorder 2, %s29
      // Predicated region
      $region101: #{tpu_custom_call.1} parent=5 // pred_check
        %p1101 = pneg %p1100
      $region102: #{tpu_custom_call.1} parent=5 // pred_check_branch
        %1103 = sbr.rel (%p1101) target = $region104
      $region103: #{tpu_custom_call.1} parent=5 // pred_region
        %s1104 = ssub.s32 %s29, 2
        // Predicated region
        $region105: #{tpu_custom_call.1} parent=103 // pred_check
          %p1105 = pneg %p336
        $region106: #{tpu_custom_call.1} parent=103 // pred_check_branch
          %1107 = sbr.rel (%p1105) target = $region108
        $region107: #{tpu_custom_call.1} parent=103 // pred_region
          %s1108 = sand.u32 %s321, 1
          %s1109 = scalar_lea.sflag [#allocation7], %s1108
          %s1110 = sand.u32 %s321, 1
          %s1111 = smul.addr %s1110, 8
          %s1112 = scalar_lea.vmem [#allocation16], %s1111
          %1113 = dma.done %s1109, 128
        $region108: #{tpu_custom_call.1} parent=103 // pred_fallthru
          _
      $region104: #{tpu_custom_call.1} parent=5 // pred_fallthru
        _
    $region6: #{tpu_custom_call.1} parent=1 // loop_footer
      %s33 = sadd.s32 1, %s29
    $region7: #{tpu_custom_call.1} parent=1 // loop_footer_branch
      %28 = sbr.rel target = $region3
    $region8: #{tpu_custom_call.1} parent=1 // loop_exit
      _
    %1114 = vsyncpa [#allocation6], 1
    %s1115 = scalar_lea.sflag [#allocation6], 1
    %1116 = vsyncpa %s1115, 1
    %1117 = vsyncpa [#allocation9], 1
    %s1118 = scalar_lea.sflag [#allocation9], 1
    %1119 = vsyncpa %s1118, 1
    %1120 = vsyncpa [#allocation12], 1
    %1121 = vsyncpa [#allocation15], 1
    %1122 = vsyncpa [#allocation7], 1
    %s1123 = scalar_lea.sflag [#allocation7], 1
    %1124 = vsyncpa %s1123, 1

</llo_original>
